<compile_context>
chip_gen: v7x
topology: tpu7x:2x2x1
jax: 0.10.0
libtpu: 0.0.40
codegen_flags: <defaults>
</compile_context>

<pallas_src>
import math

import jax
import jax.numpy as jnp
from jax import lax
from jax.experimental import pallas as pl
from jax.experimental.pallas import tpu as pltpu

_LANES = 128
_TARGET_TILE_BYTES = 4 * 1024 * 1024    # ~4 MiB per pipeline buffer
_VMEM_LIMIT = 32 * 1024 * 1024          # raises v5e's 16 MiB scoped default; safe on v6e/v7x
_MIN_PALLAS_ELEMS = 2048                # below this, plain XLA beats kernel launch overhead


def _tile_rows(rows, itemsize):
  """Rows per tile for a lane-dense (rows, 128) view: ~4 MiB per buffer, dtype-aware."""
  max_rows = max(8, _TARGET_TILE_BYTES // (_LANES * itemsize))  # 8192 f32 / 16384 bf16
  return rows if rows <= max_rows else max_rows


# ---------------------------------------------------------------------------
# Kernel 1: global abs-max reduction (warmup path: log_threshold = log2(max|x|))
# ---------------------------------------------------------------------------
def _make_absmax_kernel(total_rows, tile_rows, nblocks, nb_per_core):
  has_partial = (total_rows % tile_rows) != 0
  chunks = tile_rows // 8           # tile_rows is a multiple of 8 on the Pallas path

  def _chunk_max(blk):              # (tile_rows, 128) -> (8, 128); pure VPU maxes
    return jnp.max(blk.reshape(chunks, 8, _LANES), axis=0)

  def kernel(x_ref, o_ref, acc_ref):
    c = pl.program_id(0)
    i = pl.program_id(1)

    @pl.when(i == 0)
    def _init():
      acc_ref[...] = jnp.zeros_like(acc_ref)

    absx = jnp.abs(x_ref[...].astype(jnp.float32))
    blk_idx = jnp.minimum(c * nb_per_core + i, nblocks - 1)

    if has_partial:
      is_last_blk = blk_idx == nblocks - 1

      @pl.when(is_last_blk)
      def _masked():
        row_ids = blk_idx * tile_rows + lax.broadcasted_iota(
            jnp.int32, (tile_rows, _LANES), 0)
        masked = jnp.where(row_ids < total_rows, absx, 0.0)
        acc_ref[...] = jnp.maximum(acc_ref[...], _chunk_max(masked))

      @pl.when(jnp.logical_not(is_last_blk))
      def _full():
        acc_ref[...] = jnp.maximum(acc_ref[...], _chunk_max(absx))
    else:
      acc_ref[...] = jnp.maximum(acc_ref[...], _chunk_max(absx))

    @pl.when(i == nb_per_core - 1)
    def _finalize():
      o_ref[...] = jnp.max(acc_ref[...]).reshape(1, 1, 1)

  return kernel


def _absmax_pallas(x2d):
  rows = x2d.shape[0]
  tr = _tile_rows(rows, x2d.dtype.itemsize)
  nblocks = pl.cdiv(rows, tr)
  ncores = 2 if nblocks >= 2 else 1        # shard reduction across both v7x TensorCores
  nb_per_core = pl.cdiv(nblocks, ncores)

  partials = pl.pallas_call(
      _make_absmax_kernel(rows, tr, nblocks, nb_per_core),
      out_shape=jax.ShapeDtypeStruct((ncores, 1, 1), jnp.float32),
      grid=(ncores, nb_per_core),
      in_specs=[pl.BlockSpec(
          (tr, _LANES),
          lambda c, i: (jnp.minimum(c * nb_per_core + i, nblocks - 1), 0))],
      out_specs=pl.BlockSpec((1, 1, 1), lambda c, i: (c, 0, 0)),
      scratch_shapes=[pltpu.VMEM((8, _LANES), jnp.float32)],
      compiler_params=pltpu.CompilerParams(
          dimension_semantics=("parallel", "arbitrary"),
          vmem_limit_bytes=_VMEM_LIMIT),
      cost_estimate=pl.CostEstimate(
          flops=2 * int(x2d.size),
          transcendentals=0,
          bytes_accessed=int(x2d.size) * x2d.dtype.itemsize),
  )(x2d)
  return jnp.max(partials)


def absmax(x):
  """max(|x|) as f32; Pallas streaming reduction for lane-dense shapes."""
  n = x.size
  rows = n // _LANES
  if n % _LANES != 0 or rows % 8 != 0 or n < _MIN_PALLAS_ELEMS:
    # TODO(synk): ragged / tiny tensors use plain XLA (no pad round trip / launch cost).
    return jnp.max(jnp.abs(x)).astype(jnp.float32)
  return _absmax_pallas(x.reshape(rows, _LANES))


# ---------------------------------------------------------------------------
# Kernel 2: TQT fake-quantize (elementwise hot path, tiled + pipelined)
# ---------------------------------------------------------------------------
def _make_tqt_quant_kernel(domain, in_dtype):
  qmax = float(domain) - 1.0
  qmin = -float(domain)
  needs_cast = jnp.dtype(in_dtype) != jnp.dtype(jnp.float32)

  def kernel(s_ref, x_ref, o_ref):
    scale = s_ref[0]          # SMEM scalars: [scale, inv_scale]
    inv_scale = s_ref[1]
    xv = x_ref[...]
    if needs_cast:
      xv = xv.astype(jnp.float32)
    # NndctFixNeuron rounding (methods 2/3): round half up (ties toward +inf).
    # floor(v + 0.5) only misrounds near 2^23 in f32, which is clipped away for
    # num_bits <= 16, so it is benign here.
    q = jnp.clip(jnp.floor(xv * inv_scale + 0.5), qmin, qmax)
    o_ref[...] = (q * scale).astype(o_ref.dtype)

  return kernel


def _tqt_quantize_pallas(x2d, sparams, domain):
  rows = x2d.shape[0]
  tr = _tile_rows(rows, x2d.dtype.itemsize)
  grid = (pl.cdiv(rows, tr),)
  return pl.pallas_call(
      _make_tqt_quant_kernel(domain, x2d.dtype),
      out_shape=jax.ShapeDtypeStruct(x2d.shape, x2d.dtype),     # native dtype I/O
      grid=grid,
      in_specs=[
          pl.BlockSpec(memory_space=pltpu.MemorySpace.SMEM),    # [scale, inv_scale]
          pl.BlockSpec((tr, _LANES), lambda i: (i, 0)),
      ],
      out_specs=pl.BlockSpec((tr, _LANES), lambda i: (i, 0)),
      compiler_params=pltpu.CompilerParams(
          dimension_semantics=("parallel",),
          vmem_limit_bytes=_VMEM_LIMIT),
      cost_estimate=pl.CostEstimate(
          flops=5 * int(x2d.size),
          transcendentals=0,
          bytes_accessed=2 * int(x2d.size) * x2d.dtype.itemsize),
  )(sparams, x2d)


def _tqt_quantize_xla(x, scale, domain):
  xf = x.astype(jnp.float32)
  q = jnp.clip(jnp.floor(xf * (1.0 / scale) + 0.5), -float(domain), float(domain) - 1.0)
  return (q * scale).astype(x.dtype)


def tqt_quantize(x, log_threshold, domain):
  ceil_logt = jnp.ceil(log_threshold.astype(jnp.float32)).reshape(())
  scale = (2.0 ** ceil_logt) / domain       # power-of-2 scaling
  n = x.size
  if n % _LANES != 0 or n < _MIN_PALLAS_ELEMS:
    # TODO(synk): ragged / tiny ('param') tensors stay on plain XLA — dispatch overhead
    # dominates there and it avoids any pad + slice-back HBM round trip.
    return _tqt_quantize_xla(x, scale, domain)
  sparams = jnp.stack([scale, 1.0 / scale]).astype(jnp.float32)
  x2d = x.reshape(n // _LANES, _LANES)
  y2d = _tqt_quantize_pallas(x2d, sparams, domain)
  return y2d.reshape(x.shape)


# ---------------------------------------------------------------------------
# Module wrapper (state handled in plain Python / JAX glue)
# ---------------------------------------------------------------------------
class TQTQuantizer:
  """JAX/Pallas port of pytorch_nndct TQTQuantizer forward pass."""

  def __init__(self, num_bits, tensor_type):
    if tensor_type not in ('param', 'blob'):
      raise ValueError("'tensor_type' must be one of ['param', 'blob']")
    self.num_bits = num_bits
    self.domain = float(2 ** (num_bits - 1))
    self.quantize_method = 3 if tensor_type == 'param' else 2
    # nn.Parameter(torch.tensor([0.0])) -> deterministic init
    self.log_threshold = jnp.zeros((1,), jnp.float32)
    self.quant_enabled = True
    self.warmup_enabled = True
    self.training = True

  def __call__(self, x):
    if not self.quant_enabled:
      return x
    if self.training and self.warmup_enabled:
      max_x = absmax(x)
      # log(max|x|)/log(2); all-zero input gives -inf, matching the PyTorch reference.
      self.log_threshold = (jnp.log(max_x) / math.log(2.0)).reshape(1).astype(jnp.float32)
      self.warmup_enabled = False
      return x
    return tqt_quantize(x, self.log_threshold, self.domain)

  def enable_quant(self, enabled=True):
    self.quant_enabled = enabled
    return self

  def disable_quant(self):
    return self.enable_quant(False)

  def enable_warmup(self, enabled=True):
    self.warmup_enabled = enabled
    return self

  def disable_warmup(self):
    return self.enable_warmup(False)


if __name__ == "__main__":
  def _reference_quantize(x, logt, domain):
    scale = (2.0 ** jnp.ceil(logt.astype(jnp.float32)).reshape(())) / domain
    inv_scale = 1.0 / scale    # NndctFixNeuron receives (domain, 1/scale)
    q = jnp.clip(jnp.floor(x.astype(jnp.float32) * inv_scale + 0.5),
                 -domain, domain - 1.0)
    return (q * scale).astype(x.dtype)

  key = jax.random.PRNGKey(0)

  # --- 1. Small NCHW activation (shape implied by the module's typical 'blob' use). ---
  x = jax.random.normal(key, (2, 4, 16, 16), dtype=jnp.float32)
  quantizer = TQTQuantizer(num_bits=8, tensor_type='blob')

  y_warm = jax.block_until_ready(quantizer(x))
  assert jnp.array_equal(y_warm, x), "warmup path must be identity"
  expected_logt = jnp.log(jnp.max(jnp.abs(x))) / math.log(2.0)
  assert jnp.allclose(quantizer.log_threshold[0], expected_logt, rtol=1e-5, atol=1e-5)

  y_quant = jax.block_until_ready(quantizer(x))
  ref = _reference_quantize(x, quantizer.log_threshold, quantizer.domain)
  assert jnp.allclose(y_quant, ref, rtol=0.0, atol=1e-6), "quantize mismatch (small)"
  assert y_quant.dtype == x.dtype and y_quant.shape == x.shape

  # --- 2. Larger tensor: big tiles, partial last block, 2-way split abs-max. ---
  x_big = 3.0 * jax.random.normal(jax.random.PRNGKey(1), (5, 64, 64, 128),
                                  dtype=jnp.float32)
  q_big = TQTQuantizer(num_bits=8, tensor_type='blob')
  _ = jax.block_until_ready(q_big(x_big))            # warmup: Pallas abs-max
  expected_logt_big = jnp.log(jnp.max(jnp.abs(x_big))) / math.log(2.0)
  assert jnp.allclose(q_big.log_threshold[0], expected_logt_big, rtol=1e-5, atol=1e-5)
  y_big = jax.block_until_ready(q_big(x_big))
  ref_big = _reference_quantize(x_big, q_big.log_threshold, q_big.domain)
  assert jnp.allclose(y_big, ref_big, rtol=0.0, atol=1e-6), "quantize mismatch (big)"

  # --- 3. Tiny ragged 'param' tensor: exercises the plain-XLA fallback path. ---
  w = jax.random.normal(jax.random.PRNGKey(2), (3, 7, 5), dtype=jnp.float32)
  q_w = TQTQuantizer(num_bits=8, tensor_type='param')
  _ = jax.block_until_ready(q_w(w))                  # warmup (fallback absmax)
  y_w = jax.block_until_ready(q_w(w))
  ref_w = _reference_quantize(w, q_w.log_threshold, q_w.domain)
  assert jnp.allclose(y_w, ref_w, rtol=0.0, atol=1e-6), "quantize mismatch (fallback)"

  print("KERNEL_OK")
</pallas_src>

<mosaic_0001>
module attributes {stable_mosaic.version = 11 : i64} {
  func.func @kernel(%arg0: i32, %arg1: i32, %arg2: memref<16x128xf32, #tpu.memory_space<vmem>>, %arg3: memref<1x1x1xf32, #tpu.memory_space<vmem>>, %arg4: memref<8x128xf32, #tpu.memory_space<vmem>>) attributes {dimension_semantics = [#tpu.dimension_semantics<parallel>, #tpu.dimension_semantics<arbitrary>], iteration_bounds = array<i64: 1, 1>, scalar_prefetch = 0 : i64, scratch_operands = 1 : i64, tpu.core_type = #tpu.core_type<tc>, window_params = [{transform_indices = @transform_0, window_bounds = array<i64: 16, 128>}, {transform_indices = @transform_1, window_bounds = array<i64: 1, 1, 1>}]} {
    %c0_i32 = arith.constant 0 : i32
    %0 = arith.cmpi eq, %arg1, %c0_i32 : i32
    %1 = arith.extui %0 : i1 to i32
    %c0_i32_0 = arith.constant 0 : i32
    %2 = arith.cmpi ne, %1, %c0_i32_0 : i32
    scf.if %2 {
      %cst_8 = arith.constant 0.000000e+00 : f32
      %13 = vector.broadcast %cst_8 : f32 to vector<8x128xf32>
      %c0_9 = arith.constant 0 : index
      %c0_10 = arith.constant 0 : index
      %14 = vector.load %arg4[%c0_9, %c0_10] : memref<8x128xf32, #tpu.memory_space<vmem>>, vector<8x128xf32>
      tpu.vector_store %arg4[%c0_9, %c0_10], %13 {strides = array<i32>} : memref<8x128xf32, #tpu.memory_space<vmem>>, vector<8x128xf32>,
    } else {
    }
    %c0 = arith.constant 0 : index
    %c0_1 = arith.constant 0 : index
    %3 = vector.load %arg2[%c0, %c0_1] : memref<16x128xf32, #tpu.memory_space<vmem>>, vector<16x128xf32>
    %4 = math.absf %3 : vector<16x128xf32>
    %c0_2 = arith.constant 0 : index
    %c0_3 = arith.constant 0 : index
    %5 = vector.load %arg4[%c0_2, %c0_3] : memref<8x128xf32, #tpu.memory_space<vmem>>, vector<8x128xf32>
    %6 = vector.shape_cast %4 : vector<16x128xf32> to vector<2x8x128xf32>
    %cst = arith.constant dense<0xFF800000> : vector<8x128xf32>
    %7 = vector.multi_reduction <maximumf>, %6, %cst [0] : vector<2x8x128xf32> to vector<8x128xf32>
    %8 = arith.maximumf %5, %7 : vector<8x128xf32>
    %c0_4 = arith.constant 0 : index
    %c0_5 = arith.constant 0 : index
    %9 = vector.load %arg4[%c0_4, %c0_5] : memref<8x128xf32, #tpu.memory_space<vmem>>, vector<8x128xf32>
    tpu.vector_store %arg4[%c0_4, %c0_5], %8 {strides = array<i32>} : memref<8x128xf32, #tpu.memory_space<vmem>>, vector<8x128xf32>,
    %c0_i32_6 = arith.constant 0 : i32
    %10 = arith.cmpi eq, %arg1, %c0_i32_6 : i32
    %11 = arith.extui %10 : i1 to i32
    %c0_i32_7 = arith.constant 0 : i32
    %12 = arith.cmpi ne, %11, %c0_i32_7 : i32
    scf.if %12 {
      %c0_8 = arith.constant 0 : index
      %c0_9 = arith.constant 0 : index
      %13 = vector.load %arg4[%c0_8, %c0_9] : memref<8x128xf32, #tpu.memory_space<vmem>>, vector<8x128xf32>
      %14 = vector.shape_cast %13 : vector<8x128xf32> to vector<1x8x128xf32>
      %cst_10 = arith.constant dense<0xFF800000> : vector<1xf32>
      %15 = vector.multi_reduction <maximumf>, %14, %cst_10 [1, 2] : vector<1x8x128xf32> to vector<1xf32>
      %16 = vector.shape_cast %15 : vector<1xf32> to vector<1x1x1xf32>
      %17 = vector.extract %16[0, 0, 0] : f32 from vector<1x1x1xf32>
      %18 = vector.broadcast %17 : f32 to vector<1x1x1xf32>
      %c0_11 = arith.constant 0 : index
      %c0_12 = arith.constant 0 : index
      %c0_13 = arith.constant 0 : index
      %19 = vector.load %arg3[%c0_11, %c0_12, %c0_13] : memref<1x1x1xf32, #tpu.memory_space<vmem>>, vector<1x1x1xf32>
      tpu.vector_store %arg3[%c0_11, %c0_12, %c0_13], %18 {strides = array<i32>} : memref<1x1x1xf32, #tpu.memory_space<vmem>>, vector<1x1x1xf32>,
    } else {
    }
    return
  }
  func.func @transform_0(%arg0: i32, %arg1: i32) -> (i32, i32) {
    %c1_i32 = arith.constant 1 : i32
    %0 = arith.muli %arg0, %c1_i32 : i32
    %1 = arith.addi %0, %arg1 : i32
    %c0_i32 = arith.constant 0 : i32
    %2 = arith.minsi %1, %c0_i32 : i32
    %c0_i32_0 = arith.constant 0 : i32
    %c0_i32_1 = arith.constant 0 : i32
    return %2, %c0_i32_0 : i32, i32
  }
  func.func @transform_1(%arg0: i32, %arg1: i32) -> (i32, i32, i32) {
    %c0_i32 = arith.constant 0 : i32
    %c0_i32_0 = arith.constant 0 : i32
    %c0_i32_1 = arith.constant 0 : i32
    return %arg0, %c0_i32, %c0_i32_0 : i32, i32, i32
  }
}

</mosaic_0001>

<llo_original>
// kernel: tpu_custom_call.1
$region0: #{tpu_custom_call.1}
  #allocation0 [shape = 'u32[]', space=smem, size = 0x4, offset = 0x4, fixed_abs, tag = 'smem constant byte address 0x4 - core index']
  #allocation1 [shape = 'u32[144,128]{1,0:T(1,128)}', space=vmem, size = 0x12000, scoped, tag = 'internal scratch']
  #allocation2 [shape = 'f32[8,128]{1,0:T(8,128)}', space=vmem, size = 0x1000, scoped, tag = 'scratch operand']
  %s0 = inlined_call_operand.hbm [shape: f32[16,128], index: 0, kind: input, shape index: {}]
  %s1 = inlined_call_operand.hbm [shape: f32[1,1,1], index: 1, kind: output, shape index: {}]
  %s2 = sld [smem:[#allocation0]]
  $region26: #{tpu_custom_call.1} parent=0
    _
  %s4 = ssub.s32 1, %s2
  %s5 = scalar_select 0, %s4, %s2
  $region1: #{tpu_custom_call.1} parent=0
    #allocation3 [shape = 'u8[8192]{0}', space=vmem, size = 0x2000, scoped, tag = 'input window, operand 0, single buffered']
    #allocation4 [shape = 's32[1]{0}', space=sflag, size = 0x4, scoped, tag = 'scoped memory for tpu_custom_call.1']
    #allocation5 [shape = 's32[1]{0}', space=sflag, size = 0x4, scoped, tag = 'scoped memory for tpu_custom_call.1']
    #allocation6 [shape = 'u8[512]{0}', space=vmem, size = 0x400, scoped, tag = 'output window, operand 0, single buffered']
    %6 = vsyncpa [#allocation4], 0
    %7 = vsyncpa [#allocation5], 0
    // Predicated region
    $region2: #{tpu_custom_call.1} parent=1 // pred_check
      _
    $region3: #{tpu_custom_call.1} parent=1 // pred_check_branch
      %9 = sbr.rel (0) target = $region5
    $region4: #{tpu_custom_call.1} parent=1 // pred_region
      %s10 = sadd.s32 0, 0
      %p11 = scmp.lt.s32.totalorder %s10, 0
      %s12 = scalar_select %p11, %s10, 0
      %s13 = smul.u32 2, %s12
      %s15 = ssub.s32 256, 256
      %16 = vsyncadd [#allocation4], %s15
      %s17 = smul.addr %s13, 128
      %s18 = scalar_lea.hbm %s0, %s17
      %s19 = sshll.u32 [#allocation3], 4
      %s20 = int_to_ptr.vmem [resolvable:$true] %s19
      %25 = dma.hbm_to_vmem [thread:$0]  %s18, 256, %s20, [#allocation4], 128, 128, 8
    $region5: #{tpu_custom_call.1} parent=1 // pred_fallthru
      _
    // Predicated region
    $region6: #{tpu_custom_call.1} parent=1 // pred_check
      _
    $region7: #{tpu_custom_call.1} parent=1 // pred_check_branch
      %27 = sbr.rel (0) target = $region9
    $region8: #{tpu_custom_call.1} parent=1 // pred_region
      %28 = dma.done [#allocation4], 256
    $region9: #{tpu_custom_call.1} parent=1 // pred_fallthru
      _
    %s29 = sadd.s32 0, 0
    %p30 = scmp.lt.s32.totalorder %s29, 0
    %s31 = scalar_select %p30, %s29, 0
    %s32 = smul.u32 2, %s31
    %p33 = scmp.eq.s32.totalorder 0, 0
    // Predicated region
    $region10: #{tpu_custom_call.1} parent=1 // pred_check
      %p34 = pneg %p33
    $region11: #{tpu_custom_call.1} parent=1 // pred_check_branch
      %36 = sbr.rel (%p34) target = $region13
    $region12: #{tpu_custom_call.1} parent=1 // pred_region
      %37 = vst [vmem:[#allocation2] sm:$0xff] 0.0
    $region13: #{tpu_custom_call.1} parent=1 // pred_fallthru
      _
    %v38 = vld [vmem:[#allocation3] sm:$0xff]
    %v39 = vld [vmem:[#allocation3 + $0x8] sm:$0xff]
    %v40 = vand.u32 2147483647, %v38
    %v41 = vand.u32 2147483647, %v39
    %v42 = vld [vmem:[#allocation2] sm:$0xff]
    %v43 = vmax.f32 %v40, %v41
    %v44 = vmax.f32 %v42, %v43
    %45 = vst [vmem:[#allocation2] sm:$0xff] %v44
    // Predicated region
    $region14: #{tpu_custom_call.1} parent=1 // pred_check
      %p46 = pneg %p33
    $region15: #{tpu_custom_call.1} parent=1 // pred_check_branch
      %48 = sbr.rel (%p46) target = $region17
    $region16: #{tpu_custom_call.1} parent=1 // pred_region
      %v49 = vld [vmem:[#allocation2] sm:$0xff]
      %50 = vmax.xlane.f32.xlu0 %v49
      %v51 = vpop.xlane.xlu0 %50
      %v52 = vrot.slane %v51, 4
      %v53 = vmax.f32 %v51, %v52
      %v54 = vrot.slane %v53, 2
      %v55 = vmax.f32 %v53, %v54
      %v56 = vrot.slane %v55, 1
      %v57 = vmax.f32 %v55, %v56
      %s58 = vtos %v57
      %v59 = vstv %s58
      %vm60 = vcmask 0
      %61 = vst.msk [vmem:[#allocation6] sm:$0x1] %vm60, %v59
    $region17: #{tpu_custom_call.1} parent=1 // pred_fallthru
      _
    // Predicated region
    $region18: #{tpu_custom_call.1} parent=1 // pred_check
      _
    $region19: #{tpu_custom_call.1} parent=1 // pred_check_branch
      %63 = sbr.rel (0) target = $region21
    $region20: #{tpu_custom_call.1} parent=1 // pred_region
      %s65 = ssub.s32 16, 16
      %66 = vsyncadd [#allocation5], %s65
      %s68 = sshll.u32 [#allocation6], 4
      %s69 = int_to_ptr.vmem [resolvable:$true] %s68
      %71 = dma.vmem_to_hbm [thread:$0]  %s69, 16, %s1, [#allocation5]
    $region21: #{tpu_custom_call.1} parent=1 // pred_fallthru
      _
    // Predicated region
    $region22: #{tpu_custom_call.1} parent=1 // pred_check
      _
    $region23: #{tpu_custom_call.1} parent=1 // pred_check_branch
      %73 = sbr.rel (0) target = $region25
    $region24: #{tpu_custom_call.1} parent=1 // pred_region
      %74 = dma.done [#allocation5], 16
    $region25: #{tpu_custom_call.1} parent=1 // pred_fallthru
      _
    %75 = vsyncpa [#allocation4], 1
    %76 = vsyncpa [#allocation5], 1

</llo_original>
